<compile_context>
chip_gen: v5e
topology: v5e:2x2
jax: 0.10.0
libtpu: 0.0.40
codegen_flags: <defaults>
</compile_context>

<pallas_src>
import numpy as np
import jax
import jax.numpy as jnp
from jax.experimental import pallas as pl
from jax.experimental.pallas import tpu as pltpu

_BIG = 1e30  # plain Python float -> inlined literal


def _round_up(x, m):
    return ((x + m - 1) // m) * m


def _chamfer_tile_kernel(jlo_ref, jcnt_ref, a_ref, bt_ref, incl_ref, outcl_ref,
                         rowmin_ref, colmin_ref):
    # jlo_ref/jcnt_ref : SMEM (num_i,) i32 -- per-row-tile column-block range
    # a_ref            : VMEM (tm, 8)  f32 -- [-2*p, |p|^2, 1, 0..] (sorted rows)
    # bt_ref           : VMEM (8, tn)  f32 -- [q ; 1 ; |q|^2 ; 0..] (sorted cols)
    # incl_ref         : VMEM (tm, 1)  i32 -- sorted input cluster ids
    # outcl_ref        : VMEM (1, tn)  i32 -- sorted output cluster ids
    # rowmin_ref       : VMEM (tm, 1)  f32 -- row-min accumulator (resident over j)
    # colmin_ref       : VMEM (num_jb, tn) f32 -- col-min accumulator (resident
    #                    over the whole grid; row jb covers columns jb*tn..)
    i = pl.program_id(0)
    j = pl.program_id(1)

    @pl.when(jnp.logical_and(i == 0, j == 0))
    def _():
        colmin_ref[...] = jnp.full(colmin_ref.shape, _BIG, colmin_ref.dtype)

    @pl.when(j == 0)
    def _():
        rowmin_ref[...] = jnp.full(rowmin_ref.shape, _BIG, rowmin_ref.dtype)

    @pl.when(j < jcnt_ref[i])
    def _():
        # Single MXU matmul gives |p|^2 + |q|^2 - 2 p.q (norms folded into the
        # K=8 operands in the wrapper); accumulation happens in the MXU in f32.
        dist = jnp.dot(a_ref[...], bt_ref[...],
                       preferred_element_type=jnp.float32)        # (tm, tn)
        same = incl_ref[...] == outcl_ref[...]                     # (tm, tn)
        masked = jnp.where(same, dist, _BIG)

        tile_rowmin = jnp.min(masked, axis=1, keepdims=True)       # (tm, 1)
        tile_colmin = jnp.min(masked, axis=0, keepdims=True)       # (1, tn)

        rowmin_ref[...] = jnp.minimum(rowmin_ref[...], tile_rowmin)

        jb = jlo_ref[i] + j                                        # actual col block
        cur = colmin_ref[pl.ds(jb, 1), :]                          # (1, tn)
        colmin_ref[pl.ds(jb, 1), :] = jnp.minimum(cur, tile_colmin)


def chamfer_cluster_loss(in_pts, in_cl, out_pts, out_cl, *,
                         tm=256, tn=4096, validate=True):
    """Cluster-matched chamfer loss; returns a scalar f32 on device.

    Cluster preprocessing (sort by cluster, per-cluster offsets, per-row-tile
    column ranges) is data dependent and done host-side with numpy, so cluster
    arrays must be concrete (not traced) -- same constraint as the PyTorch
    module, whose Python loop over `range(max(clusters))` is data dependent.
    """
    in_pts = jnp.asarray(in_pts, jnp.float32)
    out_pts = jnp.asarray(out_pts, jnp.float32)
    in_cl_np = np.asarray(in_cl).astype(np.int64)
    out_cl_np = np.asarray(out_cl).astype(np.int64)

    N1, D = in_pts.shape
    N2, D2 = out_pts.shape
    Dp = 8  # padded K for the MXU; needs D + 2 <= Dp for the folded norms
    if D != D2:
        raise ValueError("point dimensionality mismatch")
    if D + 2 > Dp:
        raise ValueError("point dimension must be <= 6 for the folded-norm operands")

    nb = int(in_cl_np.max())  # cluster id == nb is excluded (range(nb))
    if validate:
        # Module's assert (host-side anyway since preprocessing is host-side).
        assert nb == int(out_cl_np.max()), "max(input_clusters) != max(output_clusters)"
        assert int(in_cl_np.min()) >= 0 and int(out_cl_np.min()) >= 0

    # ---- host-side sort by cluster id + per-cluster column offsets ----------
    order1 = np.argsort(in_cl_np, kind="stable")
    order2 = np.argsort(out_cl_np, kind="stable")
    in_cl_s = in_cl_np[order1]
    out_cl_s = out_cl_np[order2]

    # starts2[c] = first sorted-column index of cluster c (c in 0..nb+1).
    starts2 = np.searchsorted(out_cl_s, np.arange(nb + 2))
    if validate:
        starts1 = np.searchsorted(in_cl_s, np.arange(nb + 2))
        cnt1 = np.diff(starts1)[:nb]
        cnt2 = np.diff(starts2)[:nb]
        if nb > 0 and (np.any(cnt1 == 0) or np.any(cnt2 == 0)):
            # The PyTorch reference would raise on an empty per-cluster argmin;
            # surface it instead of silently summing the +BIG sentinel.
            raise ValueError("a cluster id < max(clusters) is empty in one cloud")

    # ---- tile sizes (tm multiple of 8, tn multiple of 128) -------------------
    tm = _round_up(int(min(tm, _round_up(max(N1, 1), 8))), 8)
    tn = _round_up(int(min(tn, _round_up(max(N2, 1), 128))), 128)
    N1p = _round_up(N1, tm)
    N2p = _round_up(N2, tn)
    num_i = N1p // tm
    num_jb = N2p // tn

    # ---- per-row-tile column-block ranges (block-diagonal restriction) ------
    jlo = np.zeros((num_i,), np.int32)
    jcnt = np.ones((num_i,), np.int32)   # >= 1 so index_maps stay in range
    for b in range(num_i):
        lo = b * tm
        hi = min(lo + tm, N1)
        if hi <= lo:
            continue                      # pure-padding tile: one fully masked visit
        c_lo = int(in_cl_s[lo])
        c_hi = int(in_cl_s[hi - 1])       # sorted -> min/max are the end rows
        col_lo = int(starts2[c_lo])
        col_hi = int(starts2[c_hi + 1])
        if col_hi > col_lo:
            jb_lo = col_lo // tn
            jb_hi = -(-col_hi // tn)      # ceil
            jlo[b] = jb_lo
            jcnt[b] = jb_hi - jb_lo
    num_j = max(1, int(jcnt.max()))

    # ---- device-side operand construction (norms folded into K=8) -----------
    p1 = in_pts[jnp.asarray(order1)]                     # (N1, D) sorted
    p2 = out_pts[jnp.asarray(order2)]                    # (N2, D) sorted
    a2 = jnp.sum(p1 * p1, axis=1)                        # (N1,)
    b2 = jnp.sum(p2 * p2, axis=1)                        # (N2,)

    a = jnp.zeros((N1p, Dp), jnp.float32)
    a = a.at[:N1, :D].set(-2.0 * p1)
    a = a.at[:N1, D].set(a2)
    a = a.at[:N1, D + 1].set(1.0)

    bt = jnp.zeros((Dp, N2p), jnp.float32)
    bt = bt.at[:D, :N2].set(p2.T)
    bt = bt.at[D, :N2].set(1.0)
    bt = bt.at[D + 1, :N2].set(b2)

    # Padded rows/cols get impossible cluster ids; they never match anything.
    in_cl_p = jnp.full((N1p, 1), -1, jnp.int32).at[:N1, 0].set(
        jnp.asarray(in_cl_s, jnp.int32))
    out_cl_p = jnp.full((1, N2p), -2, jnp.int32).at[0, :N2].set(
        jnp.asarray(out_cl_s, jnp.int32))

    # ---- VMEM budget: blocks + (tm,tn) intermediates + resident colmin ------
    vmem_limit = int(min(
        48 * 1024 * 1024,
        max(32 * 1024 * 1024,
            8 * tm * tn * 4
            + 2 * (tm * Dp + Dp * tn + tm * 128 + 8 * tn) * 4
            + 2 * N2p * 4
            + (2 << 20))))

    def _col_block(i, j, jlo_ref, jcnt_ref):
        # Clamp so padding steps (j >= jcnt[i]) reuse the previous block
        # (no new DMA); compute for those steps is skipped in the kernel.
        return (0, jlo_ref[i] + jnp.minimum(j, jcnt_ref[i] - 1))

    rowmin, colmin = pl.pallas_call(
        _chamfer_tile_kernel,
        out_shape=(
            jax.ShapeDtypeStruct((N1p, 1), jnp.float32),      # row mins (sorted order)
            jax.ShapeDtypeStruct((num_jb, tn), jnp.float32),  # col mins (sorted order)
        ),
        grid_spec=pltpu.PrefetchScalarGridSpec(
            num_scalar_prefetch=2,
            grid=(num_i, num_j),
            in_specs=[
                pl.BlockSpec((tm, Dp), lambda i, j, jlo, jcnt: (i, 0)),
                pl.BlockSpec((Dp, tn), _col_block),
                pl.BlockSpec((tm, 1), lambda i, j, jlo, jcnt: (i, 0)),
                pl.BlockSpec((1, tn), _col_block),
            ],
            out_specs=(
                pl.BlockSpec((tm, 1), lambda i, j, jlo, jcnt: (i, 0)),
                pl.BlockSpec((num_jb, tn), lambda i, j, jlo, jcnt: (0, 0)),
            ),
        ),
        compiler_params=pltpu.CompilerParams(
            # colmin is a cross-row-tile accumulator, so both axes must be
            # sequential here; see TODO(synk) above for the v7x CORE_PARALLEL
            # variant with per-row-tile colmin partials.
            dimension_semantics=("arbitrary", "arbitrary"),
            vmem_limit_bytes=vmem_limit),
    )(jnp.asarray(jlo), jnp.asarray(jcnt), a, bt, in_cl_p, out_cl_p)

    # ---- tiny final reduction in plain JAX -----------------------------------
    in_cl_dev = in_cl_p[:, 0]
    out_cl_dev = out_cl_p[0, :]
    valid_in = jnp.logical_and(in_cl_dev >= 0, in_cl_dev < nb)
    valid_out = jnp.logical_and(out_cl_dev >= 0, out_cl_dev < nb)

    # Clamp once after the reductions (f32 cancellation can give ~-1e-6 values).
    row_min = jnp.maximum(rowmin[:, 0], 0.0)          # (N1p,)
    col_min = jnp.maximum(colmin.reshape(-1), 0.0)    # (N2p,)

    loss = (jnp.sum(jnp.where(valid_in, row_min, 0.0))
            + jnp.sum(jnp.where(valid_out, col_min, 0.0)))
    return loss


def chamfer_forward(parameter_list, **kwargs):
    """Mirrors ChamferDistLossFullNetwork.forward(parameter_list)."""
    input_points = parameter_list[0][0]
    input_clusters = parameter_list[1][0]
    output_points = parameter_list[2][0]
    output_clusters = parameter_list[3][0]
    return chamfer_cluster_loss(input_points, input_clusters,
                                output_points, output_clusters, **kwargs)


def reference_loss(in_pts, in_cl, out_pts, out_cl):
    """Faithful host-side translation of the PyTorch per-cluster loop."""
    in_pts = np.asarray(in_pts); out_pts = np.asarray(out_pts)
    in_cl = np.asarray(in_cl); out_cl = np.asarray(out_cl)
    nb = int(in_cl.max())
    loss = 0.0
    for i in range(nb):  # cluster id == nb excluded, as in the PyTorch code
        c1 = in_pts[in_cl == i]
        c2 = out_pts[out_cl == i]
        d = ((c1[:, None, :] - c2[None, :, :]) ** 2).sum(-1)
        loss += d.min(axis=1).sum() + d.min(axis=0).sum()
    return np.float32(loss)


if __name__ == "__main__":
    key = jax.random.PRNGKey(0)
    k1, k2, k3, k4 = jax.random.split(key, 4)

    # Small, non-tile-aligned shapes; clusters 0..4 (torch loop uses 0..3).
    N1, N2, D, NC = 200, 300, 3, 5
    in_pts = jax.random.normal(k1, (N1, D), dtype=jnp.float32)
    out_pts = jax.random.normal(k2, (N2, D), dtype=jnp.float32)
    in_cl = jax.random.randint(k3, (N1,), 0, NC, dtype=jnp.int32)
    out_cl = jax.random.randint(k4, (N2,), 0, NC, dtype=jnp.int32)
    # Every cluster id (including the max) appears in both clouds (an empty
    # cluster would crash the PyTorch reference).
    in_cl = in_cl.at[:NC].set(jnp.arange(NC, dtype=jnp.int32))
    out_cl = out_cl.at[:NC].set(jnp.arange(NC, dtype=jnp.int32))

    parameter_list = [(in_pts,), (in_cl,), (out_pts,), (out_cl,)]
    ref = reference_loss(in_pts, in_cl, out_pts, out_cl)

    # Small tiles: exercises the multi-tile block-diagonal grid, padding rows/
    # cols, and column blocks that are never visited (left at +BIG, masked out).
    loss_small = jax.block_until_ready(chamfer_forward(parameter_list, tm=64, tn=128))
    # Production defaults (tm=256, tn=4096), auto-clamped to the tiny demo shapes.
    loss_default = jax.block_until_ready(chamfer_forward(parameter_list))

    assert np.allclose(np.asarray(loss_small), ref, rtol=2e-3, atol=1e-2), (loss_small, ref)
    assert np.allclose(np.asarray(loss_default), ref, rtol=2e-3, atol=1e-2), (loss_default, ref)
    print("KERNEL_OK")
</pallas_src>

<mosaic_0001>
module attributes {stable_mosaic.version = 11 : i64} {
  func.func @_chamfer_tile_kernel(%arg0: i32, %arg1: i32, %arg2: memref<4xi32, #tpu.memory_space<smem>>, %arg3: memref<4xi32, #tpu.memory_space<smem>>, %arg4: memref<64x8xf32, #tpu.memory_space<vmem>>, %arg5: memref<8x128xf32, #tpu.memory_space<vmem>>, %arg6: memref<64x1xi32, #tpu.memory_space<vmem>>, %arg7: memref<1x128xi32, #tpu.memory_space<vmem>>, %arg8: memref<64x1xf32, #tpu.memory_space<vmem>>, %arg9: memref<3x128xf32, #tpu.memory_space<vmem>>) attributes {dimension_semantics = [#tpu.dimension_semantics<arbitrary>, #tpu.dimension_semantics<arbitrary>], iteration_bounds = array<i64: 4, 2>, scalar_prefetch = 2 : i64, scratch_operands = 0 : i64, tpu.core_type = #tpu.core_type<tc>, window_params = [{transform_indices = @transform_0, window_bounds = array<i64: 64, 8>}, {transform_indices = @transform_1, window_bounds = array<i64: 8, 128>}, {transform_indices = @transform_2, window_bounds = array<i64: 64, 1>}, {transform_indices = @transform_3, window_bounds = array<i64: 1, 128>}, {transform_indices = @transform_4, window_bounds = array<i64: 64, 1>}, {pipeline_mode = #tpu.pipeline_mode<synchronous>, transform_indices = @transform_5, window_bounds = array<i64: 3, 128>}]} {
    %c0_i32 = arith.constant 0 : i32
    %0 = arith.cmpi eq, %arg0, %c0_i32 : i32
    %c0_i32_0 = arith.constant 0 : i32
    %1 = arith.cmpi eq, %arg1, %c0_i32_0 : i32
    %2 = arith.andi %0, %1 : i1
    %3 = arith.extui %2 : i1 to i32
    %c0_i32_1 = arith.constant 0 : i32
    %4 = arith.cmpi ne, %3, %c0_i32_1 : i32
    scf.if %4 {
      %cst = arith.constant 1.000000e+30 : f32
      %13 = vector.broadcast %cst : f32 to vector<3x128xf32>
      %c0 = arith.constant 0 : index
      %c0_5 = arith.constant 0 : index
      %14 = vector.load %arg9[%c0, %c0_5] : memref<3x128xf32, #tpu.memory_space<vmem>>, vector<3x128xf32>
      tpu.vector_store %arg9[%c0, %c0_5], %13 {strides = array<i32>} : memref<3x128xf32, #tpu.memory_space<vmem>>, vector<3x128xf32>,
    } else {
    }
    %c0_i32_2 = arith.constant 0 : i32
    %5 = arith.cmpi eq, %arg1, %c0_i32_2 : i32
    %6 = arith.extui %5 : i1 to i32
    %c0_i32_3 = arith.constant 0 : i32
    %7 = arith.cmpi ne, %6, %c0_i32_3 : i32
    scf.if %7 {
      %cst = arith.constant 1.000000e+30 : f32
      %13 = vector.broadcast %cst : f32 to vector<64x1xf32>
      %c0 = arith.constant 0 : index
      %c0_5 = arith.constant 0 : index
      %14 = vector.load %arg8[%c0, %c0_5] : memref<64x1xf32, #tpu.memory_space<vmem>>, vector<64x1xf32>
      tpu.vector_store %arg8[%c0, %c0_5], %13 {strides = array<i32>} : memref<64x1xf32, #tpu.memory_space<vmem>>, vector<64x1xf32>,
    } else {
    }
    %8 = arith.index_cast %arg0 : i32 to index
    %9 = memref.load %arg3[%8] : memref<4xi32, #tpu.memory_space<smem>>
    %10 = arith.cmpi slt, %arg1, %9 : i32
    %11 = arith.extui %10 : i1 to i32
    %c0_i32_4 = arith.constant 0 : i32
    %12 = arith.cmpi ne, %11, %c0_i32_4 : i32
    scf.if %12 {
      %c0 = arith.constant 0 : index
      %c0_5 = arith.constant 0 : index
      %13 = vector.load %arg4[%c0, %c0_5] : memref<64x8xf32, #tpu.memory_space<vmem>>, vector<64x8xf32>
      %c0_6 = arith.constant 0 : index
      %c0_7 = arith.constant 0 : index
      %14 = vector.load %arg5[%c0_6, %c0_7] : memref<8x128xf32, #tpu.memory_space<vmem>>, vector<8x128xf32>
      %cst = arith.constant dense<0.000000e+00> : vector<64x128xf32>
      %15 = tpu.matmul %13, %14, %cst {dimension_numbers = #tpu.dot_dimension_numbers<[1], [0], [0], [1], [0, 0, 1, 1], [], []>} : vector<64x8xf32>, vector<8x128xf32>, vector<64x128xf32> -> vector<64x128xf32>
      %c0_8 = arith.constant 0 : index
      %c0_9 = arith.constant 0 : index
      %16 = vector.load %arg6[%c0_8, %c0_9] : memref<64x1xi32, #tpu.memory_space<vmem>>, vector<64x1xi32>
      %c0_10 = arith.constant 0 : index
      %c0_11 = arith.constant 0 : index
      %17 = vector.load %arg7[%c0_10, %c0_11] : memref<1x128xi32, #tpu.memory_space<vmem>>, vector<1x128xi32>
      %18 = vector.broadcast %16 : vector<64x1xi32> to vector<64x128xi32>
      %19 = vector.broadcast %17 : vector<1x128xi32> to vector<64x128xi32>
      %20 = arith.cmpi eq, %18, %19 : vector<64x128xi32>
      %cst_12 = arith.constant 1.000000e+30 : f32
      %21 = vector.broadcast %cst_12 : f32 to vector<64x128xf32>
      %22 = arith.select %20, %15, %21 : vector<64x128xi1>, vector<64x128xf32>
      %cst_13 = arith.constant dense<0x7F800000> : vector<64xf32>
      %23 = vector.multi_reduction <minimumf>, %22, %cst_13 [1] : vector<64x128xf32> to vector<64xf32>
      %24 = vector.shape_cast %23 : vector<64xf32> to vector<64x1xf32>
      %cst_14 = arith.constant dense<0x7F800000> : vector<128xf32>
      %25 = vector.multi_reduction <minimumf>, %22, %cst_14 [0] : vector<64x128xf32> to vector<128xf32>
      %26 = vector.shape_cast %25 : vector<128xf32> to vector<1x128xf32>
      %c0_15 = arith.constant 0 : index
      %c0_16 = arith.constant 0 : index
      %27 = vector.load %arg8[%c0_15, %c0_16] : memref<64x1xf32, #tpu.memory_space<vmem>>, vector<64x1xf32>
      %28 = arith.minimumf %27, %24 : vector<64x1xf32>
      %c0_17 = arith.constant 0 : index
      %c0_18 = arith.constant 0 : index
      %29 = vector.load %arg8[%c0_17, %c0_18] : memref<64x1xf32, #tpu.memory_space<vmem>>, vector<64x1xf32>
      tpu.vector_store %arg8[%c0_17, %c0_18], %28 {strides = array<i32>} : memref<64x1xf32, #tpu.memory_space<vmem>>, vector<64x1xf32>,
      %30 = arith.index_cast %arg0 : i32 to index
      %31 = memref.load %arg2[%30] : memref<4xi32, #tpu.memory_space<smem>>
      %32 = arith.addi %31, %arg1 : i32
      %33 = arith.index_cast %32 : i32 to index
      %c0_19 = arith.constant 0 : index
      %34 = vector.load %arg9[%33, %c0_19] : memref<3x128xf32, #tpu.memory_space<vmem>>, vector<1x128xf32>
      %35 = arith.minimumf %34, %26 : vector<1x128xf32>
      %36 = arith.index_cast %32 : i32 to index
      %c0_20 = arith.constant 0 : index
      %37 = vector.load %arg9[%36, %c0_20] : memref<3x128xf32, #tpu.memory_space<vmem>>, vector<1x128xf32>
      tpu.vector_store %arg9[%36, %c0_20], %35 {strides = array<i32>} : memref<3x128xf32, #tpu.memory_space<vmem>>, vector<1x128xf32>,
    } else {
    }
    return
  }
  func.func @transform_0(%arg0: i32, %arg1: i32, %arg2: memref<4xi32, #tpu.memory_space<smem>>, %arg3: memref<4xi32, #tpu.memory_space<smem>>) -> (i32, i32) {
    %c0_i32 = arith.constant 0 : i32
    %c0_i32_0 = arith.constant 0 : i32
    return %arg0, %c0_i32 : i32, i32
  }
  func.func @transform_1(%arg0: i32, %arg1: i32, %arg2: memref<4xi32, #tpu.memory_space<smem>>, %arg3: memref<4xi32, #tpu.memory_space<smem>>) -> (i32, i32) {
    %0 = arith.index_cast %arg0 : i32 to index
    %1 = memref.load %arg2[%0] : memref<4xi32, #tpu.memory_space<smem>>
    %2 = arith.index_cast %arg0 : i32 to index
    %3 = memref.load %arg3[%2] : memref<4xi32, #tpu.memory_space<smem>>
    %c1_i32 = arith.constant 1 : i32
    %4 = arith.subi %3, %c1_i32 : i32
    %5 = arith.minsi %arg1, %4 : i32
    %6 = arith.addi %1, %5 : i32
    %c0_i32 = arith.constant 0 : i32
    %c0_i32_0 = arith.constant 0 : i32
    return %c0_i32, %6 : i32, i32
  }
  func.func @transform_2(%arg0: i32, %arg1: i32, %arg2: memref<4xi32, #tpu.memory_space<smem>>, %arg3: memref<4xi32, #tpu.memory_space<smem>>) -> (i32, i32) {
    %c0_i32 = arith.constant 0 : i32
    %c0_i32_0 = arith.constant 0 : i32
    return %arg0, %c0_i32 : i32, i32
  }
  func.func @transform_3(%arg0: i32, %arg1: i32, %arg2: memref<4xi32, #tpu.memory_space<smem>>, %arg3: memref<4xi32, #tpu.memory_space<smem>>) -> (i32, i32) {
    %0 = arith.index_cast %arg0 : i32 to index
    %1 = memref.load %arg2[%0] : memref<4xi32, #tpu.memory_space<smem>>
    %2 = arith.index_cast %arg0 : i32 to index
    %3 = memref.load %arg3[%2] : memref<4xi32, #tpu.memory_space<smem>>
    %c1_i32 = arith.constant 1 : i32
    %4 = arith.subi %3, %c1_i32 : i32
    %5 = arith.minsi %arg1, %4 : i32
    %6 = arith.addi %1, %5 : i32
    %c0_i32 = arith.constant 0 : i32
    %c0_i32_0 = arith.constant 0 : i32
    return %c0_i32, %6 : i32, i32
  }
  func.func @transform_4(%arg0: i32, %arg1: i32, %arg2: memref<4xi32, #tpu.memory_space<smem>>, %arg3: memref<4xi32, #tpu.memory_space<smem>>) -> (i32, i32) {
    %c0_i32 = arith.constant 0 : i32
    %c0_i32_0 = arith.constant 0 : i32
    return %arg0, %c0_i32 : i32, i32
  }
  func.func @transform_5(%arg0: i32, %arg1: i32, %arg2: memref<4xi32, #tpu.memory_space<smem>>, %arg3: memref<4xi32, #tpu.memory_space<smem>>) -> (i32, i32) {
    %c0_i32 = arith.constant 0 : i32
    %c0_i32_0 = arith.constant 0 : i32
    %c0_i32_1 = arith.constant 0 : i32
    return %c0_i32, %c0_i32_0 : i32, i32
  }
}

</mosaic_0001>

<llo_original>
// kernel: tpu_custom_call.1
$region0: #{tpu_custom_call.1}
  #allocation0 [shape = 'u32[]', space=smem, size = 0x4, offset = 0x4, fixed_abs, tag = 'smem constant byte address 0x4 - core index']
  #allocation1 [shape = 'u32[72,128]{1,0:T(1,128)}', space=vmem, size = 0x9000, scoped, tag = 'internal scratch']
  #allocation2 [shape = 's32[1]{0}', space=sflag, size = 0x4, scoped, tag = 'scoped memory for tpu_custom_call.1']
  #allocation3 [shape = 'u8[512]{0}', space=smem, size = 0x200, scoped, tag = 'prefetched SMEM operand 0']
  #allocation4 [shape = 'u8[512]{0}', space=smem, size = 0x200, scoped, tag = 'prefetched SMEM operand 1']
  %s0 = inlined_call_operand.vmem [shape: s32[4], index: 0, kind: input, shape index: {}]
  %s1 = inlined_call_operand.vmem [shape: s32[4], index: 1, kind: input, shape index: {}]
  %s2 = inlined_call_operand.vmem [shape: f32[256,8], index: 2, kind: input, shape index: {}]
  %s3 = inlined_call_operand.vmem [shape: f32[8,384], index: 3, kind: input, shape index: {}]
  %s4 = inlined_call_operand.vmem [shape: s32[256,1], index: 4, kind: input, shape index: {}]
  %s5 = inlined_call_operand.vmem [shape: s32[1,384], index: 5, kind: input, shape index: {}]
  %s6 = inlined_call_operand.vmem [shape: f32[256,1], index: 6, kind: output, shape index: {0}]
  %s7 = inlined_call_operand.hbm [shape: f32[3,128], index: 7, kind: output, shape index: {1}]
  %8 = xla_tuple %s6, %s7
  %s9 = sld [smem:[#allocation0]]
  $region69: #{tpu_custom_call.1} parent=0
    _
  %s11 = ssub.s32 1, %s9
  %s12 = scalar_select 0, %s11, %s9
  %s14 = sshll.u32 %s0, 4
  %s15 = int_to_ptr.vmem [resolvable:$true] %s14
  %17 = dma.vmem_to_smem %s15, 16, [#allocation3], [#allocation2]
  %s19 = sshll.u32 %s1, 4
  %s20 = int_to_ptr.vmem [resolvable:$true] %s19
  %22 = dma.vmem_to_smem %s20, 16, [#allocation4], [#allocation2]
  %24 = dma.done [#allocation2], 32
  %25 = sfence
  $region1: #{tpu_custom_call.1} parent=0
    #allocation5 [shape = 'u8[2048]{0}', space=vmem, size = 0x800, scoped, tag = 'output window, operand 1, single buffered']
    #allocation6 [shape = 's32[2]{0}', space=sflag, size = 0x8, scoped, tag = 'scoped memory for tpu_custom_call.1']
    %26 = vsyncpa [#allocation6], 0
    loop: start=0, step=1, limit=10
    $region2: #{tpu_custom_call.1} parent=1 // loop_pre_header
      _
    $region3: #{tpu_custom_call.1} parent=1 // loop_header
      %s28 = sphi 0, %s32
      %p29 = scmp.ge.s32.totalorder %s28, 10
      %s35 = sphi 0, %s47
      %s36 = sphi 0, %s43
      %s37 = sphi 0, %s35
      %s38 = sphi 0, %s36
      %s39 = sphi 0, %s37
      %s40 = sphi 0, %s38
      %s50 = sphi 0, %s52
      %s53 = sphi 0, %s50
      %s54 = sphi 0, %s53
      %s70 = sphi 0, %s54
      %s88 = sphi 0, %s90
      %s91 = sphi 0, %s88
      %s92 = sphi 0, %s91
      %s108 = sphi 0, %s92
      %s114 = sphi 0, %s116
      %s117 = sphi 0, %s114
      %s118 = sphi 0, %s117
      %s134 = sphi 0, %s118
      %s152 = sphi 0, %s154
      %s155 = sphi 0, %s152
      %s156 = sphi 0, %s155
      %s172 = sphi 0, %s156
      %s178 = sphi 0, %s180
      %s181 = sphi 0, %s178
      %s182 = sphi 0, %s181
      %s198 = sphi 0, %s182
      %s202 = sphi 0, %s202
      %s204 = sphi 0, %s202
      %s205 = sphi 0, %s204
      %s219 = sphi 0, %s205
    $region4: #{tpu_custom_call.1} parent=1 // loop_header_branch
      %31 = sbr.rel (%p29) target = $region8
    $region5: #{tpu_custom_call.1} parent=1 // loop_body
      %s33 = ssub.s32 %s28, 1
      %s34 = ssub.s32 %s28, 2
      %s41 = sadd.s32 1, %s36
      %p42 = scmp.ge.s32.totalorder %s41, 2
      %s43 = scalar_select %p42, 0, %s41
      %s44 = sadd.s32 1, %s35
      %s45 = scalar_select %p42, %s44, %s35
      %p46 = scmp.ge.s32.totalorder %s45, 4
      %s47 = scalar_select %p46, 0, %s45
      %s48 = ssub.s32 %s35, %s47
      %p49 = scmp.eq.s32.totalorder %s48, 0
      %s51 = sadd.s32 %s50, 1
      %s52 = scalar_select %p49, %s50, %s51
      %p55 = pneg %p49
      %p56 = scmp.eq.s32.totalorder %s28, 7
      %p57 = por %p55, %p56
      %p58 = scmp.ne.s32.totalorder %s50, %s53
      %p59 = scmp.eq.s32.totalorder %s28, 0
      %p60 = por %p58, %p59
      %p61 = scmp.ne.s32.totalorder %s50, %s53
      %p62 = scmp.eq.s32.totalorder %s33, 7
      %p63 = por %p61, %p62
      %p64 = scmp.ne.s32.totalorder %s53, %s54
      %p65 = scmp.eq.s32.totalorder %s33, 0
      %p66 = por %p64, %p65
      %p67 = scmp.ne.s32.totalorder %s53, %s54
      %p68 = scmp.eq.s32.totalorder %s34, 7
      %p69 = por %p67, %p68
      %p71 = scmp.ne.s32.totalorder %s54, %s70
      %p72 = scmp.eq.s32.totalorder %s34, 0
      %p73 = por %p71, %p72
      %s74 = sld [smem:[#allocation3 + %s35]]
      %s75 = sld [smem:[#allocation4 + %s35]]
      %s76 = ssub.s32 %s75, 1
      %p77 = scmp.lt.s32.totalorder %s36, %s76
      %s78 = scalar_select %p77, %s36, %s76
      %s79 = sadd.s32 %s74, %s78
      %s80 = sld [smem:[#allocation3 + %s47]]
      %s81 = sld [smem:[#allocation4 + %s47]]
      %s82 = ssub.s32 %s81, 1
      %p83 = scmp.lt.s32.totalorder %s43, %s82
      %s84 = scalar_select %p83, %s43, %s82
      %s85 = sadd.s32 %s80, %s84
      %s86 = ssub.s32 %s79, %s85
      %p87 = scmp.eq.s32.totalorder %s86, 0
      %s89 = sadd.s32 %s88, 1
      %s90 = scalar_select %p87, %s88, %s89
      %p93 = pneg %p87
      %p94 = scmp.eq.s32.totalorder %s28, 7
      %p95 = por %p93, %p94
      %p96 = scmp.ne.s32.totalorder %s88, %s91
      %p97 = scmp.eq.s32.totalorder %s28, 0
      %p98 = por %p96, %p97
      %p99 = scmp.ne.s32.totalorder %s88, %s91
      %p100 = scmp.eq.s32.totalorder %s33, 7
      %p101 = por %p99, %p100
      %p102 = scmp.ne.s32.totalorder %s91, %s92
      %p103 = scmp.eq.s32.totalorder %s33, 0
      %p104 = por %p102, %p103
      %p105 = scmp.ne.s32.totalorder %s91, %s92
      %p106 = scmp.eq.s32.totalorder %s34, 7
      %p107 = por %p105, %p106
      %p109 = scmp.ne.s32.totalorder %s92, %s108
      %p110 = scmp.eq.s32.totalorder %s34, 0
      %p111 = por %p109, %p110
      %s112 = ssub.s32 %s35, %s47
      %p113 = scmp.eq.s32.totalorder %s112, 0
      %s115 = sadd.s32 %s114, 1
      %s116 = scalar_select %p113, %s114, %s115
      %p119 = pneg %p113
      %p120 = scmp.eq.s32.totalorder %s28, 7
      %p121 = por %p119, %p120
      %p122 = scmp.ne.s32.totalorder %s114, %s117
      %p123 = scmp.eq.s32.totalorder %s28, 0
      %p124 = por %p122, %p123
      %p125 = scmp.ne.s32.totalorder %s114, %s117
      %p126 = scmp.eq.s32.totalorder %s33, 7
      %p127 = por %p125, %p126
      %p128 = scmp.ne.s32.totalorder %s117, %s118
      %p129 = scmp.eq.s32.totalorder %s33, 0
      %p130 = por %p128, %p129
      %p131 = scmp.ne.s32.totalorder %s117, %s118
      %p132 = scmp.eq.s32.totalorder %s34, 7
      %p133 = por %p131, %p132
      %p135 = scmp.ne.s32.totalorder %s118, %s134
      %p136 = scmp.eq.s32.totalorder %s34, 0
      %p137 = por %p135, %p136
      %s138 = sld [smem:[#allocation3 + %s35]]
      %s139 = sld [smem:[#allocation4 + %s35]]
      %s140 = ssub.s32 %s139, 1
      %p141 = scmp.lt.s32.totalorder %s36, %s140
      %s142 = scalar_select %p141, %s36, %s140
      %s143 = sadd.s32 %s138, %s142
      %s144 = sld [smem:[#allocation3 + %s47]]
      %s145 = sld [smem:[#allocation4 + %s47]]
      %s146 = ssub.s32 %s145, 1
      %p147 = scmp.lt.s32.totalorder %s43, %s146
      %s148 = scalar_select %p147, %s43, %s146
      %s149 = sadd.s32 %s144, %s148
      %s150 = ssub.s32 %s143, %s149
      %p151 = scmp.eq.s32.totalorder %s150, 0
      %s153 = sadd.s32 %s152, 1
      %s154 = scalar_select %p151, %s152, %s153
      %p157 = pneg %p151
      %p158 = scmp.eq.s32.totalorder %s28, 7
      %p159 = por %p157, %p158
      %p160 = scmp.ne.s32.totalorder %s152, %s155
      %p161 = scmp.eq.s32.totalorder %s28, 0
      %p162 = por %p160, %p161
      %p163 = scmp.ne.s32.totalorder %s152, %s155
      %p164 = scmp.eq.s32.totalorder %s33, 7
      %p165 = por %p163, %p164
      %p166 = scmp.ne.s32.totalorder %s155, %s156
      %p167 = scmp.eq.s32.totalorder %s33, 0
      %p168 = por %p166, %p167
      %p169 = scmp.ne.s32.totalorder %s155, %s156
      %p170 = scmp.eq.s32.totalorder %s34, 7
      %p171 = por %p169, %p170
      %p173 = scmp.ne.s32.totalorder %s156, %s172
      %p174 = scmp.eq.s32.totalorder %s34, 0
      %p175 = por %p173, %p174
      %s176 = ssub.s32 %s35, %s47
      %p177 = scmp.eq.s32.totalorder %s176, 0
      %s179 = sadd.s32 %s178, 1
      %s180 = scalar_select %p177, %s178, %s179
      %p183 = pneg %p177
      %p184 = scmp.eq.s32.totalorder %s28, 7
      %p185 = por %p183, %p184
      %p186 = scmp.ne.s32.totalorder %s178, %s181
      %p187 = scmp.eq.s32.totalorder %s28, 0
      %p188 = por %p186, %p187
      %p189 = scmp.ne.s32.totalorder %s178, %s181
      %p190 = scmp.eq.s32.totalorder %s33, 7
      %p191 = por %p189, %p190
      %p192 = scmp.ne.s32.totalorder %s181, %s182
      %p193 = scmp.eq.s32.totalorder %s33, 0
      %p194 = por %p192, %p193
      %p195 = scmp.ne.s32.totalorder %s181, %s182
      %p196 = scmp.eq.s32.totalorder %s34, 7
      %p197 = por %p195, %p196
      %p199 = scmp.ne.s32.totalorder %s182, %s198
      %p200 = scmp.eq.s32.totalorder %s34, 0
      %p201 = por %p199, %p200
      %s203 = sadd.s32 %s202, 1
      %p206 = scmp.eq.s32.totalorder %s28, 7
      %p207 = scmp.ne.s32.totalorder %s202, %s204
      %p208 = scmp.eq.s32.totalorder %s28, 0
      %p209 = por %p207, %p208
      %p210 = scmp.ne.s32.totalorder %s202, %s204
      %p211 = scmp.eq.s32.totalorder %s33, 7
      %p212 = por %p210, %p211
      %p213 = scmp.ne.s32.totalorder %s204, %s205
      %p214 = scmp.eq.s32.totalorder %s33, 0
      %p215 = por %p213, %p214
      %p216 = scmp.ne.s32.totalorder %s204, %s205
      %p217 = scmp.eq.s32.totalorder %s34, 7
      %p218 = por %p216, %p217
      %p220 = scmp.ne.s32.totalorder %s205, %s219
      %p221 = scmp.eq.s32.totalorder %s34, 0
      %p222 = por %p220, %p221
      %p223 = scmp.le.s32.totalorder 1, %s28
      %p224 = scmp.lt.s32.totalorder %s28, 9
      %p225 = pnand %p223, %p224
      %p226 = pneg %p225
      // Predicated region
      $region9: #{tpu_custom_call.1} parent=5 // pred_check
        _
      $region10: #{tpu_custom_call.1} parent=5 // pred_check_branch
        %228 = sbr.rel (%p225) target = $region12
      $region11: #{tpu_custom_call.1} parent=5 // pred_region
        %s229 = ssub.s32 %s28, 1
      $region12: #{tpu_custom_call.1} parent=5 // pred_fallthru
        _
      %p230 = scmp.lt.s32.totalorder %s28, 8
      // Predicated region
      $region13: #{tpu_custom_call.1} parent=5 // pred_check
        %p231 = pneg %p230
      $region14: #{tpu_custom_call.1} parent=5 // pred_check_branch
        %233 = sbr.rel (%p231) target = $region16
      $region15: #{tpu_custom_call.1} parent=5 // pred_region
        // Predicated region
        $region17: #{tpu_custom_call.1} parent=15 // pred_check
          %p234 = pneg %p60
        $region18: #{tpu_custom_call.1} parent=15 // pred_check_branch
          %236 = sbr.rel (%p234) target = $region20
        $region19: #{tpu_custom_call.1} parent=15 // pred_region
          %s237 = smul.u32 8, %s35
          %p238 = scmp.lt.s32.totalorder %s237, 31
          %s239 = scalar_select %p238, %s237, 31
          %s240 = smul.addr %s239, 8
          %s241 = scalar_lea.vmem %s2, %s240
          %s242 = smul.u32 8, %s35
        $region20: #{tpu_custom_call.1} parent=15 // pred_fallthru
          _
        // Predicated region
        $region21: #{tpu_custom_call.1} parent=15 // pred_check
          %p243 = pneg %p98
        $region22: #{tpu_custom_call.1} parent=15 // pred_check_branch
          %245 = sbr.rel (%p243) target = $region24
        $region23: #{tpu_custom_call.1} parent=15 // pred_region
          %s246 = sld [smem:[#allocation3 + %s35]]
          %s247 = sld [smem:[#allocation4 + %s35]]
          %s248 = ssub.s32 %s247, 1
          %p249 = scmp.lt.s32.totalorder %s36, %s248
          %s250 = scalar_select %p249, %s36, %s248
          %s251 = sadd.s32 %s246, %s250
          %p252 = scmp.lt.s32.totalorder %s251, 2
          %s253 = scalar_select %p252, %s251, 2
          %s254 = smul.addr %s253, 8
          %s255 = scalar_lea.vmem %s3, %s254
          %s256 = sld [smem:[#allocation3 + %s35]]
          %s257 = sld [smem:[#allocation4 + %s35]]
          %s258 = ssub.s32 %s257, 1
          %p259 = scmp.lt.s32.totalorder %s36, %s258
          %s260 = scalar_select %p259, %s36, %s258
          %s261 = sadd.s32 %s256, %s260
        $region24: #{tpu_custom_call.1} parent=15 // pred_fallthru
          _
        // Predicated region
        $region25: #{tpu_custom_call.1} parent=15 // pred_check
          %p262 = pneg %p124
        $region26: #{tpu_custom_call.1} parent=15 // pred_check_branch
          %264 = sbr.rel (%p262) target = $region28
        $region27: #{tpu_custom_call.1} parent=15 // pred_region
          %s265 = smul.u32 8, %s35
          %p266 = scmp.lt.s32.totalorder %s265, 31
          %s267 = scalar_select %p266, %s265, 31
          %s268 = smul.addr %s267, 8
          %s269 = scalar_lea.vmem %s4, %s268
          %s270 = smul.u32 8, %s35
        $region28: #{tpu_custom_call.1} parent=15 // pred_fallthru
          _
        // Predicated region
        $region29: #{tpu_custom_call.1} parent=15 // pred_check
          %p271 = pneg %p162
        $region30: #{tpu_custom_call.1} parent=15 // pred_check_branch
          %273 = sbr.rel (%p271) target = $region32
        $region31: #{tpu_custom_call.1} parent=15 // pred_region
          %s274 = sld [smem:[#allocation3 + %s35]]
          %s275 = sld [smem:[#allocation4 + %s35]]
          %s276 = ssub.s32 %s275, 1
          %p277 = scmp.lt.s32.totalorder %s36, %s276
          %s278 = scalar_select %p277, %s36, %s276
          %s279 = sadd.s32 %s274, %s278
          %p280 = scmp.lt.s32.totalorder %s279, 2
          %s281 = scalar_select %p280, %s279, 2
          %s282 = scalar_lea.vmem %s5, %s281
          %s283 = sld [smem:[#allocation3 + %s35]]
          %s284 = sld [smem:[#allocation4 + %s35]]
          %s285 = ssub.s32 %s284, 1
          %p286 = scmp.lt.s32.totalorder %s36, %s285
          %s287 = scalar_select %p286, %s36, %s285
          %s288 = sadd.s32 %s283, %s287
        $region32: #{tpu_custom_call.1} parent=15 // pred_fallthru
          _
      $region16: #{tpu_custom_call.1} parent=5 // pred_fallthru
        _
      %p289 = scmp.le.s32.totalorder 1, %s28
      %p290 = scmp.lt.s32.totalorder %s28, 9
      %p291 = pnand %p289, %p290
      %p292 = pneg %p291
      // Predicated region
      $region33: #{tpu_custom_call.1} parent=5 // pred_check
        _
      $region34: #{tpu_custom_call.1} parent=5 // pred_check_branch
        %294 = sbr.rel (%p291) target = $region36
      $region35: #{tpu_custom_call.1} parent=5 // pred_region
        %s295 = ssub.s32 %s28, 1
        %s296 = smul.u32 8, %s37
        %p297 = scmp.lt.s32.totalorder %s296, 31
        %s298 = scalar_select %p297, %s296, 31
        %s299 = smul.addr %s298, 8
        %s300 = scalar_lea.vmem %s2, %s299
        %p301 = pneg %p66
        %p302 = pneg %p63
        %s303 = sld [smem:[#allocation3 + %s37]]
        %s304 = sld [smem:[#allocation4 + %s37]]
        %s305 = ssub.s32 %s304, 1
        %p306 = scmp.lt.s32.totalorder %s38, %s305
        %s307 = scalar_select %p306, %s38, %s305
        %s308 = sadd.s32 %s303, %s307
        %p309 = scmp.lt.s32.totalorder %s308, 2
        %s310 = scalar_select %p309, %s308, 2
        %s311 = smul.addr %s310, 8
        %s312 = scalar_lea.vmem %s3, %s311
        %p313 = pneg %p104
        %p314 = pneg %p101
        %s315 = smul.u32 8, %s37
        %p316 = scmp.lt.s32.totalorder %s315, 31
        %s317 = scalar_select %p316, %s315, 31
        %s318 = smul.addr %s317, 8
        %s319 = scalar_lea.vmem %s4, %s318
        %p320 = pneg %p130
        %p321 = pneg %p127
        %s322 = sld [smem:[#allocation3 + %s37]]
        %s323 = sld [smem:[#allocation4 + %s37]]
        %s324 = ssub.s32 %s323, 1
        %p325 = scmp.lt.s32.totalorder %s38, %s324
        %s326 = scalar_select %p325, %s38, %s324
        %s327 = sadd.s32 %s322, %s326
        %p328 = scmp.lt.s32.totalorder %s327, 2
        %s329 = scalar_select %p328, %s327, 2
        %s330 = scalar_lea.vmem %s5, %s329
        %p331 = pneg %p168
        %p332 = pneg %p165
        %p333 = pneg %p194
        %p334 = pneg %p191
        %s335 = smul.u32 8, %s37
        %p336 = scmp.lt.s32.totalorder %s335, 31
        %s337 = scalar_select %p336, %s335, 31
        %s338 = smul.addr %s337, 8
        %s339 = scalar_lea.vmem %s6, %s338
        %p340 = pneg %p215
        %p341 = pneg %p212
        %s342 = smul.u32 8, %s37
        %p343 = scmp.lt.s32.totalorder %s342, 31
        %s344 = scalar_select %p343, %s342, 31
        %s345 = smul.addr %s344, 8
        %s346 = scalar_lea.vmem %s2, %s345
        %s347 = smul.u32 8, %s37
        %s348 = sld [smem:[#allocation3 + %s37]]
        %s349 = sld [smem:[#allocation4 + %s37]]
        %s350 = ssub.s32 %s349, 1
        %p351 = scmp.lt.s32.totalorder %s38, %s350
        %s352 = scalar_select %p351, %s38, %s350
        %s353 = sadd.s32 %s348, %s352
        %p354 = scmp.lt.s32.totalorder %s353, 2
        %s355 = scalar_select %p354, %s353, 2
        %s356 = smul.addr %s355, 8
        %s357 = scalar_lea.vmem %s3, %s356
        %s358 = sld [smem:[#allocation3 + %s37]]
        %s359 = sld [smem:[#allocation4 + %s37]]
        %s360 = ssub.s32 %s359, 1
        %p361 = scmp.lt.s32.totalorder %s38, %s360
        %s362 = scalar_select %p361, %s38, %s360
        %s363 = sadd.s32 %s358, %s362
        %s364 = smul.u32 8, %s37
        %p365 = scmp.lt.s32.totalorder %s364, 31
        %s366 = scalar_select %p365, %s364, 31
        %s367 = smul.addr %s366, 8
        %s368 = scalar_lea.vmem %s4, %s367
        %s369 = smul.u32 8, %s37
        %s370 = sld [smem:[#allocation3 + %s37]]
        %s371 = sld [smem:[#allocation4 + %s37]]
        %s372 = ssub.s32 %s371, 1
        %p373 = scmp.lt.s32.totalorder %s38, %s372
        %s374 = scalar_select %p373, %s38, %s372
        %s375 = sadd.s32 %s370, %s374
        %p376 = scmp.lt.s32.totalorder %s375, 2
        %s377 = scalar_select %p376, %s375, 2
        %s378 = scalar_lea.vmem %s5, %s377
        %s379 = sld [smem:[#allocation3 + %s37]]
        %s380 = sld [smem:[#allocation4 + %s37]]
        %s381 = ssub.s32 %s380, 1
        %p382 = scmp.lt.s32.totalorder %s38, %s381
        %s383 = scalar_select %p382, %s38, %s381
        %s384 = sadd.s32 %s379, %s383
        %s385 = smul.u32 8, %s37
        %p386 = scmp.lt.s32.totalorder %s385, 31
        %s387 = scalar_select %p386, %s385, 31
        %s388 = smul.addr %s387, 8
        %s389 = scalar_lea.vmem %s6, %s388
        %s390 = smul.u32 8, %s37
        %p391 = scmp.eq.s32.totalorder %s37, 0
        %p392 = scmp.eq.s32.totalorder %s38, 0
        %p393 = pnand %p391, %p392
        %p394 = pneg %p393
        // Predicated region
        $region37: #{tpu_custom_call.1} parent=35 // pred_check
          _
        $region38: #{tpu_custom_call.1} parent=35 // pred_check_branch
          %396 = sbr.rel (%p393) target = $region40
        $region39: #{tpu_custom_call.1} parent=35 // pred_region
          %397 = vst [vmem:[#allocation5] sm:$0x7] 1e+30
        $region40: #{tpu_custom_call.1} parent=35 // pred_fallthru
          _
        // Predicated region
        $region41: #{tpu_custom_call.1} parent=35 // pred_check
          %p398 = pneg %p392
        $region42: #{tpu_custom_call.1} parent=35 // pred_check_branch
          %400 = sbr.rel (%p398) target = $region44
        $region43: #{tpu_custom_call.1} parent=35 // pred_region
          %vm401 = vcmask 7168
          %402 = vst.msk [vmem:[%s389] sm:$0xff] %vm401, 1e+30
          %403 = vst.msk [vmem:[%s389 + $0x8] sm:$0xff] %vm401, 1e+30
          %404 = vst.msk [vmem:[%s389 + $0x10] sm:$0xff] %vm401, 1e+30
          %405 = vst.msk [vmem:[%s389 + $0x18] sm:$0xff] %vm401, 1e+30
          %406 = vst.msk [vmem:[%s389 + $0x20] sm:$0xff] %vm401, 1e+30
          %407 = vst.msk [vmem:[%s389 + $0x28] sm:$0xff] %vm401, 1e+30
          %408 = vst.msk [vmem:[%s389 + $0x30] sm:$0xff] %vm401, 1e+30
          %409 = vst.msk [vmem:[%s389 + $0x38] sm:$0xff] %vm401, 1e+30
        $region44: #{tpu_custom_call.1} parent=35 // pred_fallthru
          _
        %s410 = sld [smem:[#allocation4 + %s37]]
        %p411 = scmp.lt.s32.totalorder %s38, %s410
        // Predicated region
        $region45: #{tpu_custom_call.1} parent=35 // pred_check
          %p412 = pneg %p411
        $region46: #{tpu_custom_call.1} parent=35 // pred_check_branch
          %414 = sbr.rel (%p412) target = $region48
        $region47: #{tpu_custom_call.1} parent=35 // pred_region
          %v415 = vld [vmem:[%s346] sm:$0xff]
          %v416 = vld [vmem:[%s346 + $0x8] sm:$0xff]
          %v417 = vld [vmem:[%s346 + $0x10] sm:$0xff]
          %v418 = vld [vmem:[%s346 + $0x18] sm:$0xff]
          %v419 = vld [vmem:[%s346 + $0x20] sm:$0xff]
          %v420 = vld [vmem:[%s346 + $0x28] sm:$0xff]
          %v421 = vld [vmem:[%s346 + $0x30] sm:$0xff]
          %v422 = vld [vmem:[%s346 + $0x38] sm:$0xff]
          %v423 = vld [vmem:[%s357] sm:$0xff]
          %vm424 = vcmask 64512
          %v426 = vsel %vm424, %v415, 0
          %v429 = vsel %vm424, %v416, 0
          %v432 = vsel %vm424, %v417, 0
          %v435 = vsel %vm424, %v418, 0
          %v438 = vsel %vm424, %v419, 0
          %v441 = vsel %vm424, %v420, 0
          %v444 = vsel %vm424, %v421, 0
          %v447 = vsel %vm424, %v422, 0
          %449 = vmatpush.msra.mxu0 0.0
          %450 = vmatpush.msra.mxu0 0.0
          %451 = vmatpush.msra.mxu0 0.0
          %452 = vmatpush.msra.mxu0 0.0
          %453 = vmatpush.msra.mxu0 0.0
          %454 = vmatpush.msra.mxu0 0.0
          %455 = vmatpush.msra.mxu0 0.0
          %456 = vmatpush.msra.mxu0 0.0
          %457 = vmatpush.msra.mxu0 0.0
          %458 = vmatpush.msra.mxu0 0.0
          %459 = vmatpush.msra.mxu0 0.0
          %460 = vmatpush.msra.mxu0 0.0
          %461 = vmatpush.msra.mxu0 0.0
          %462 = vmatpush.msra.mxu0 0.0
          %463 = vmatpush.msra.mxu0 0.0
          %464 = vmatpush.msra.mxu0 %v423
          %465 = vmatmul.f32.gmra.mxu0 %v426
          %v466 = vpop.f32.mrf.mxu0
          %v467 = vadd.f32 0.0, %v466
          %468 = vmatmul.f32.gmra.mxu0 %v429
          %v469 = vpop.f32.mrf.mxu0
          %v470 = vadd.f32 0.0, %v469
          %471 = vmatmul.f32.gmra.mxu0 %v432
          %v472 = vpop.f32.mrf.mxu0
          %v473 = vadd.f32 0.0, %v472
          %474 = vmatmul.f32.gmra.mxu0 %v435
          %v475 = vpop.f32.mrf.mxu0
          %v476 = vadd.f32 0.0, %v475
          %477 = vmatmul.f32.gmra.mxu0 %v438
          %v478 = vpop.f32.mrf.mxu0
          %v479 = vadd.f32 0.0, %v478
          %480 = vmatmul.f32.gmra.mxu0 %v441
          %v481 = vpop.f32.mrf.mxu0
          %v482 = vadd.f32 0.0, %v481
          %483 = vmatmul.f32.gmra.mxu0 %v444
          %v484 = vpop.f32.mrf.mxu0
          %v485 = vadd.f32 0.0, %v484
          %486 = vmatmul.f32.gmra.mxu0 %v447
          %v487 = vpop.f32.mrf.mxu0
          %v488 = vadd.f32 0.0, %v487
          %489 = vdwg.mxu0
          %v490 = vld [vmem:[%s368] sm:$0xff]
          %v491 = vld [vmem:[%s368 + $0x8] sm:$0xff]
          %v492 = vld [vmem:[%s368 + $0x10] sm:$0xff]
          %v493 = vld [vmem:[%s368 + $0x18] sm:$0xff]
          %v494 = vld [vmem:[%s368 + $0x20] sm:$0xff]
          %v495 = vld [vmem:[%s368 + $0x28] sm:$0xff]
          %v496 = vld [vmem:[%s368 + $0x30] sm:$0xff]
          %v497 = vld [vmem:[%s368 + $0x38] sm:$0xff]
          %v498 = vld [vmem:[%s378] sm:$0x1]
          %499 = vset.pattern.permute.xlu0 0
          %500 = vperm.xlu0 %499, %v490
          %v501 = vpop.permute.xlu0 %500
          %502 = vset.pattern.permute.xlu0 0
          %503 = vperm.xlu0 %502, %v491
          %v504 = vpop.permute.xlu0 %503
          %505 = vset.pattern.permute.xlu0 0
          %506 = vperm.xlu0 %505, %v492
          %v507 = vpop.permute.xlu0 %506
          %508 = vset.pattern.permute.xlu0 0
          %509 = vperm.xlu0 %508, %v493
          %v510 = vpop.permute.xlu0 %509
          %511 = vset.pattern.permute.xlu0 0
          %512 = vperm.xlu0 %511, %v494
          %v513 = vpop.permute.xlu0 %512
          %514 = vset.pattern.permute.xlu0 0
          %515 = vperm.xlu0 %514, %v495
          %v516 = vpop.permute.xlu0 %515
          %517 = vset.pattern.permute.xlu0 0
          %518 = vperm.xlu0 %517, %v496
          %v519 = vpop.permute.xlu0 %518
          %520 = vset.pattern.permute.xlu0 0
          %521 = vperm.xlu0 %520, %v497
          %v522 = vpop.permute.xlu0 %521
          %v523 = vperm.slane %v498, 0
          %vm524 = vcmp.eq.s32.totalorder %v501, %v523
          %vm525 = vcmp.eq.s32.totalorder %v504, %v523
          %vm526 = vcmp.eq.s32.totalorder %v507, %v523
          %vm527 = vcmp.eq.s32.totalorder %v510, %v523
          %vm528 = vcmp.eq.s32.totalorder %v513, %v523
          %vm529 = vcmp.eq.s32.totalorder %v516, %v523
          %vm530 = vcmp.eq.s32.totalorder %v519, %v523
          %vm531 = vcmp.eq.s32.totalorder %v522, %v523
          %v532 = vsel %vm524, %v467, 1e+30
          %v533 = vsel %vm525, %v470, 1e+30
          %v534 = vsel %vm526, %v473, 1e+30
          %v535 = vsel %vm527, %v476, 1e+30
          %v536 = vsel %vm528, %v479, 1e+30
          %v537 = vsel %vm529, %v482, 1e+30
          %v538 = vsel %vm530, %v485, 1e+30
          %v539 = vsel %vm531, %v488, 1e+30
          %540 = vmin.xlane.f32.xlu0 %v532
          %v541 = vpop.xlane.xlu0 %540
          %542 = vmin.xlane.f32.xlu0 %v533
          %v543 = vpop.xlane.xlu0 %542
          %544 = vmin.xlane.f32.xlu0 %v534
          %v545 = vpop.xlane.xlu0 %544
          %546 = vmin.xlane.f32.xlu0 %v535
          %v547 = vpop.xlane.xlu0 %546
          %548 = vmin.xlane.f32.xlu0 %v536
          %v549 = vpop.xlane.xlu0 %548
          %550 = vmin.xlane.f32.xlu0 %v537
          %v551 = vpop.xlane.xlu0 %550
          %552 = vmin.xlane.f32.xlu0 %v538
          %v553 = vpop.xlane.xlu0 %552
          %554 = vmin.xlane.f32.xlu0 %v539
          %v555 = vpop.xlane.xlu0 %554
          %v556 = vmin.f32 %v532, %v536
          %v557 = vmin.f32 %v533, %v537
          %v558 = vmin.f32 %v534, %v538
          %v559 = vmin.f32 %v535, %v539
          %v560 = vmin.f32 %v556, %v557
          %v561 = vmin.f32 %v558, %v559
          %v562 = vmin.f32 %v560, %v561
          %v563 = vrot.slane %v562, 4
          %v564 = vmin.f32 %v562, %v563
          %v565 = vrot.slane %v564, 2
          %v566 = vmin.f32 %v564, %v565
          %v567 = vrot.slane %v566, 1
          %v568 = vmin.f32 %v566, %v567
          %v569 = vld [vmem:[%s389] sm:$0xff]
          %v570 = vld [vmem:[%s389 + $0x8] sm:$0xff]
          %v571 = vld [vmem:[%s389 + $0x10] sm:$0xff]
          %v572 = vld [vmem:[%s389 + $0x18] sm:$0xff]
          %v573 = vld [vmem:[%s389 + $0x20] sm:$0xff]
          %v574 = vld [vmem:[%s389 + $0x28] sm:$0xff]
          %v575 = vld [vmem:[%s389 + $0x30] sm:$0xff]
          %v576 = vld [vmem:[%s389 + $0x38] sm:$0xff]
          %v577 = vmin.f32 %v569, %v541
          %v578 = vmin.f32 %v570, %v543
          %v579 = vmin.f32 %v571, %v545
          %v580 = vmin.f32 %v572, %v547
          %v581 = vmin.f32 %v573, %v549
          %v582 = vmin.f32 %v574, %v551
          %v583 = vmin.f32 %v575, %v553
          %v584 = vmin.f32 %v576, %v555
          %vm585 = vcmask 7168
          %586 = vst.msk [vmem:[%s389] sm:$0xff] %vm585, %v577
          %587 = vst.msk [vmem:[%s389 + $0x8] sm:$0xff] %vm585, %v578
          %588 = vst.msk [vmem:[%s389 + $0x10] sm:$0xff] %vm585, %v579
          %589 = vst.msk [vmem:[%s389 + $0x18] sm:$0xff] %vm585, %v580
          %590 = vst.msk [vmem:[%s389 + $0x20] sm:$0xff] %vm585, %v581
          %591 = vst.msk [vmem:[%s389 + $0x28] sm:$0xff] %vm585, %v582
          %592 = vst.msk [vmem:[%s389 + $0x30] sm:$0xff] %vm585, %v583
          %593 = vst.msk [vmem:[%s389 + $0x38] sm:$0xff] %vm585, %v584
          %s594 = sld [smem:[#allocation3 + %s37]]
          %s595 = sadd.s32 %s594, %s38
          %s596 = scalar_lea.vmem [#allocation5], %s595
          %v597 = vld [vmem:[%s596] sm:$0x1]
          %v598 = vmin.f32 %v597, %v568
          %599 = vst [vmem:[%s596] sm:$0x1] %v598
        $region48: #{tpu_custom_call.1} parent=35 // pred_fallthru
          _
        %s600 = smul.u32 8, %s37
        %p601 = scmp.lt.s32.totalorder %s600, 31
        %s602 = scalar_select %p601, %s600, 31
        %s603 = smul.addr %s602, 8
        %s604 = scalar_lea.vmem %s6, %s603
        // Predicated region
        $region49: #{tpu_custom_call.1} parent=35 // pred_check
          %p605 = pneg %p191
        $region50: #{tpu_custom_call.1} parent=35 // pred_check_branch
          %607 = sbr.rel (%p605) target = $region52
        $region51: #{tpu_custom_call.1} parent=35 // pred_region
          %s608 = smul.u32 8, %s37
        $region52: #{tpu_custom_call.1} parent=35 // pred_fallthru
          _
        // Predicated region
        $region53: #{tpu_custom_call.1} parent=35 // pred_check
          %p609 = pneg %p212
        $region54: #{tpu_custom_call.1} parent=35 // pred_check_branch
          %611 = sbr.rel (%p609) target = $region56
        $region55: #{tpu_custom_call.1} parent=35 // pred_region
          %613 = vsyncadd [#allocation6], 0
          %s615 = sshll.u32 [#allocation5], 4
          %s616 = int_to_ptr.vmem [resolvable:$true] %s615
          %s617 = sshll.u32 %s7, 4
          %s618 = int_to_ptr.hbm [resolvable:$true] %s617
          %620 = dma.vmem_to_hbm [thread:$0]  %s616, 64, %s618, [#allocation6]
        $region56: #{tpu_custom_call.1} parent=35 // pred_fallthru
          _
        // Predicated region
        $region57: #{tpu_custom_call.1} parent=35 // pred_check
          %p621 = pneg %p212
        $region58: #{tpu_custom_call.1} parent=35 // pred_check_branch
          %623 = sbr.rel (%p621) target = $region60
        $region59: #{tpu_custom_call.1} parent=35 // pred_region
          %625 = dma.done [#allocation6], 64
        $region60: #{tpu_custom_call.1} parent=35 // pred_fallthru
          _
      $region36: #{tpu_custom_call.1} parent=5 // pred_fallthru
        _
      %p626 = scmp.le.s32.totalorder 2, %s28
      // Predicated region
      $region61: #{tpu_custom_call.1} parent=5 // pred_check
        %p627 = pneg %p626
      $region62: #{tpu_custom_call.1} parent=5 // pred_check_branch
        %629 = sbr.rel (%p627) target = $region64
      $region63: #{tpu_custom_call.1} parent=5 // pred_region
        %s630 = ssub.s32 %s28, 2
        // Predicated region
        $region65: #{tpu_custom_call.1} parent=63 // pred_check
          %p631 = pneg %p197
        $region66: #{tpu_custom_call.1} parent=63 // pred_check_branch
          %633 = sbr.rel (%p631) target = $region68
        $region67: #{tpu_custom_call.1} parent=63 // pred_region
          %s634 = smul.u32 8, %s39
          %p635 = scmp.lt.s32.totalorder %s634, 31
          %s636 = scalar_select %p635, %s634, 31
          %s637 = smul.addr %s636, 8
          %s638 = scalar_lea.vmem %s6, %s637
        $region68: #{tpu_custom_call.1} parent=63 // pred_fallthru
          _
      $region64: #{tpu_custom_call.1} parent=5 // pred_fallthru
        _
    $region6: #{tpu_custom_call.1} parent=1 // loop_footer
      %s32 = sadd.s32 1, %s28
    $region7: #{tpu_custom_call.1} parent=1 // loop_footer_branch
      %27 = sbr.rel target = $region3
    $region8: #{tpu_custom_call.1} parent=1 // loop_exit
      _
    %639 = vsyncpa [#allocation6], 1
    %s640 = scalar_lea.sflag [#allocation6], 1
    %641 = vsyncpa %s640, 1

</llo_original>
